<compile_context>
chip_gen: v5e
topology: v5e:2x2
jax: 0.10.0
libtpu: 0.0.40
codegen_flags: <defaults>
</compile_context>

<pallas_src>
import functools

import jax
import jax.numpy as jnp
from jax import lax
from jax.experimental import pallas as pl
from jax.experimental.pallas import tpu as pltpu


# Contract on dim 1 of both operands: x(m,k) . W(n,k) -> (m,n)  ==  x @ W.T
_DN = (((1,), (1,)), ((), ()))


def _vmem_limit_bytes():
    """Raise the scoped-VMEM limit above the 16/32 MiB defaults, with headroom."""
    try:
        cap = pltpu.get_tpu_info().vmem_capacity_bytes
        return int(min(100 * 1024 * 1024, cap * 3 // 4))
    except Exception:  # pragma: no cover - conservative fallback
        return 64 * 1024 * 1024


_VMEM_LIMIT = _vmem_limit_bytes()


def _cparams(sems):
    return pltpu.CompilerParams(dimension_semantics=sems,
                                vmem_limit_bytes=_VMEM_LIMIT)


# ----------------------------------------------------------------------------
# Kernels
# ----------------------------------------------------------------------------
def kv_proj_kernel(x_ref, wk_ref, wv_ref, k_ref, v_ref, *, matmul_dtype):
    """Row-tile of K = x @ Wk^T, V = x @ Wv^T (computed once per layer/source)."""
    cd = matmul_dtype
    x = x_ref[...].astype(cd)                                        # (TN, H)
    k_ref[...] = lax.dot_general(x, wk_ref[...], _DN,
                                 preferred_element_type=jnp.float32).astype(k_ref.dtype)
    v_ref[...] = lax.dot_general(x, wv_ref[...], _DN,
                                 preferred_element_type=jnp.float32).astype(v_ref.dtype)


def flash_mha_ln_kernel(xq_ref, k_ref, v_ref, bias_ref,
                        wq_ref, wo_ref, bo_ref, g_ref, b_ref, o_ref,
                        q_scr, m_scr, l_scr, acc_scr,
                        *, heads, head_size, matmul_dtype, sk):
    """Flash-style MHA over kv tiles, fused residual + LayerNorm finalize.

    grid = (batch, q-tiles, kv-tiles).  out = LN(x_q + MHA(x_q, KV)).
    """
    cd = matmul_dtype
    ki = pl.program_id(2)
    nk = pl.num_programs(2)

    TQ = q_scr.shape[0]
    TK = k_ref.shape[1]

    @pl.when(ki == 0)
    def _init():
        xq = xq_ref[0]                                               # (TQ, H)
        q = lax.dot_general(xq.astype(cd), wq_ref[...], _DN,
                            preferred_element_type=jnp.float32)
        # fold 1/sqrt(head_size) into Q once
        q_scr[...] = (q * (1.0 / (head_size ** 0.5))).astype(q_scr.dtype)
        m_scr[...] = jnp.full(m_scr.shape, -1e30, jnp.float32)
        l_scr[...] = jnp.zeros(l_scr.shape, jnp.float32)
        acc_scr[...] = jnp.zeros(acc_scr.shape, jnp.float32)

    Qh = q_scr[...].reshape(TQ, heads, head_size)                    # matmul dtype
    Kh = k_ref[0].reshape(TK, heads, head_size)
    Vh = v_ref[0].reshape(TK, heads, head_size)

    # scores: batch dim = heads (leading in output -> no extra transpose)
    s = jnp.einsum("qhd,khd->hqk", Qh, Kh,
                   preferred_element_type=jnp.float32)               # (heads, TQ, TK)
    bias = bias_ref[0].astype(jnp.float32)                           # (TQb, TK)
    s = s + bias[None, :, :]
    if sk % TK != 0:  # ragged last kv tile: mask padded key positions
        kpos = ki * TK + lax.broadcasted_iota(jnp.int32, (1, 1, TK), 2)
        s = jnp.where(kpos < sk, s, -1e30)

    m_prev = m_scr[...]                                              # (heads, TQ, 1)
    m_new = jnp.maximum(m_prev, jnp.max(s, axis=-1, keepdims=True))
    alpha = jnp.exp(m_prev - m_new)
    p = jnp.exp(s - m_new)                                           # (heads, TQ, TK)
    l_scr[...] = alpha * l_scr[...] + jnp.sum(p, axis=-1, keepdims=True)
    acc_scr[...] = alpha * acc_scr[...] + jnp.einsum(
        "hqk,khd->hqd", p.astype(cd), Vh,
        preferred_element_type=jnp.float32)                          # (heads, TQ, hs)
    m_scr[...] = m_new

    @pl.when(ki == nk - 1)
    def _finalize():
        inv_l = pl.reciprocal(l_scr[...], approx=True)
        ctx = acc_scr[...] * inv_l                                   # (heads, TQ, hs)
        ctx = jnp.transpose(ctx, (1, 0, 2)).reshape(TQ, heads * head_size)
        out = lax.dot_general(ctx.astype(cd), wo_ref[...], _DN,
                              preferred_element_type=jnp.float32) + bo_ref[...]
        # fused residual + LayerNorm (eps = 1e-5, f32 epilogue math)
        z = xq_ref[0].astype(jnp.float32) + out
        mean = jnp.mean(z, axis=-1, keepdims=True)
        var = jnp.mean((z - mean) ** 2, axis=-1, keepdims=True)
        zn = (z - mean) * lax.rsqrt(var + 1e-5)
        o_ref[0] = (zn * g_ref[...] + b_ref[...]).astype(o_ref.dtype)


def ffn_ln_kernel(x_ref, w1_ref, b1_ref, w2_ref, b2_ref, g_ref, b_ref, o_ref,
                  acc_ref, *, matmul_dtype):
    """P-tiled LN(x + relu(x W1^T + b1) W2^T + b2); grid = (row-tiles, P-tiles)."""
    cd = matmul_dtype
    pi = pl.program_id(1)

    @pl.when(pi == 0)
    def _init():
        acc_ref[...] = jnp.zeros(acc_ref.shape, jnp.float32)

    x = x_ref[...].astype(cd)                                        # (TN, H)
    h = lax.dot_general(x, w1_ref[...], _DN,
                        preferred_element_type=jnp.float32) + b1_ref[...]
    h = jnp.maximum(h, 0.0)
    acc_ref[...] += lax.dot_general(h.astype(cd), w2_ref[...], _DN,
                                    preferred_element_type=jnp.float32)

    @pl.when(pi == pl.num_programs(1) - 1)
    def _finalize():
        z = x_ref[...].astype(jnp.float32) + acc_ref[...] + b2_ref[...]
        mean = jnp.mean(z, axis=-1, keepdims=True)
        var = jnp.mean((z - mean) ** 2, axis=-1, keepdims=True)
        zn = (z - mean) * lax.rsqrt(var + 1e-5)
        o_ref[...] = (zn * g_ref[...] + b_ref[...]).astype(o_ref.dtype)


def linear_kernel(x_ref, w_ref, b_ref, o_ref, *, matmul_dtype):
    """(vocab-tile, row-tile) block of x W^T + b."""
    cd = matmul_dtype
    o = lax.dot_general(x_ref[...].astype(cd), w_ref[...], _DN,
                        preferred_element_type=jnp.float32) + b_ref[...]
    o_ref[...] = o.astype(o_ref.dtype)


# ----------------------------------------------------------------------------
# Tiling helpers (all choices keep blocks (8,128)/(16,128)-legal: tiles are
# either the full dim or a multiple of 128 / 32)
# ----------------------------------------------------------------------------
def _row_tile(n, cap=512):
    return n if n <= cap else cap


def _q_tile(sq):
    return sq if sq <= 128 else 128


def _kv_tile(sk):
    if sk <= 512:
        return sk
    for t in (512, 256, 128):
        if sk % t == 0:
            return t
    # TODO(synk): Sk > 512 not divisible by 128 falls back to full-Sk KV blocks.
    return sk


def _p_tile(p):
    if p <= 512:
        return p
    for t in (512, 256, 128):
        if p % t == 0:
            return t
    return p


def _vocab_tile(v):
    return v if v <= 1024 else 512


def _act_dtype(matmul_dtype):
    return jnp.float32 if matmul_dtype == jnp.float32 else jnp.bfloat16


# ----------------------------------------------------------------------------
# Pallas-call wrappers
# ----------------------------------------------------------------------------
def kv_project(x_kv, wk, wv, matmul_dtype):
    """K/V projections computed once per (layer, source); outputs in matmul dtype."""
    B, Sk, H = x_kv.shape
    N = B * Sk
    TN = _row_tile(N)
    kernel = functools.partial(kv_proj_kernel, matmul_dtype=matmul_dtype)
    k, v = pl.pallas_call(
        kernel,
        out_shape=(jax.ShapeDtypeStruct((N, H), matmul_dtype),
                   jax.ShapeDtypeStruct((N, H), matmul_dtype)),
        grid=(pl.cdiv(N, TN),),
        in_specs=[
            pl.BlockSpec((TN, H), lambda i: (i, 0)),
            pl.BlockSpec((H, H), lambda i: (0, 0)),
            pl.BlockSpec((H, H), lambda i: (0, 0)),
        ],
        out_specs=(pl.BlockSpec((TN, H), lambda i: (i, 0)),
                   pl.BlockSpec((TN, H), lambda i: (i, 0))),
        compiler_params=_cparams(("parallel",)),
    )(x_kv.reshape(N, H), wk, wv)
    return k.reshape(B, Sk, H), v.reshape(B, Sk, H)


def mha_add_ln(x_q, k, v, bias, wq, wo, bo, ln_g, ln_b, heads,
               matmul_dtype, act_dtype):
    """LN(x_q + MHA(x_q, K, V)) with flash-style kv tiling."""
    B, Sq, H = x_q.shape
    Sk = k.shape[1]
    hs = H // heads
    TQ = _q_tile(Sq)
    TK = _kv_tile(Sk)
    nq = pl.cdiv(Sq, TQ)
    nk = pl.cdiv(Sk, TK)
    Mq = bias.shape[1]
    assert Mq in (1, Sq), "mask must broadcast over queries or match Sq"

    if Mq == 1:
        bias_spec = pl.BlockSpec((1, 1, TK), lambda b, qi, ki: (b, 0, ki))
    else:
        bias_spec = pl.BlockSpec((1, TQ, TK), lambda b, qi, ki: (b, qi, ki))

    kernel = functools.partial(flash_mha_ln_kernel, heads=heads, head_size=hs,
                               matmul_dtype=matmul_dtype, sk=Sk)
    return pl.pallas_call(
        kernel,
        out_shape=jax.ShapeDtypeStruct((B, Sq, H), act_dtype),
        grid=(B, nq, nk),
        in_specs=[
            pl.BlockSpec((1, TQ, H), lambda b, qi, ki: (b, qi, 0)),   # x_q / residual
            pl.BlockSpec((1, TK, H), lambda b, qi, ki: (b, ki, 0)),   # K
            pl.BlockSpec((1, TK, H), lambda b, qi, ki: (b, ki, 0)),   # V
            bias_spec,                                                # additive mask
            pl.BlockSpec((H, H), lambda b, qi, ki: (0, 0)),           # Wq
            pl.BlockSpec((H, H), lambda b, qi, ki: (0, 0)),           # Wo
            pl.BlockSpec((1, H), lambda b, qi, ki: (0, 0)),           # bo
            pl.BlockSpec((1, H), lambda b, qi, ki: (0, 0)),           # ln gamma
            pl.BlockSpec((1, H), lambda b, qi, ki: (0, 0)),           # ln beta
        ],
        out_specs=pl.BlockSpec((1, TQ, H), lambda b, qi, ki: (b, qi, 0)),
        scratch_shapes=[
            pltpu.VMEM((TQ, H), matmul_dtype),          # scaled Q
            pltpu.VMEM((heads, TQ, 1), jnp.float32),    # running max
            pltpu.VMEM((heads, TQ, 1), jnp.float32),    # running denom
            pltpu.VMEM((heads, TQ, hs), jnp.float32),   # running context
        ],
        compiler_params=_cparams(("parallel", "parallel", "arbitrary")),
    )(x_q, k, v, bias, wq, wo, bo, ln_g, ln_b)


def ffn_add_ln(x, w1, b1, w2, b2, ln_g, ln_b, matmul_dtype, act_dtype):
    """LN(x + FFN(x)), tiled over flattened rows and the hidden dim P."""
    B, S, H = x.shape
    N = B * S
    P = w1.shape[0]
    TN = _row_tile(N)
    TP = _p_tile(P)

    kernel = functools.partial(ffn_ln_kernel, matmul_dtype=matmul_dtype)
    out = pl.pallas_call(
        kernel,
        out_shape=jax.ShapeDtypeStruct((N, H), act_dtype),
        grid=(pl.cdiv(N, TN), pl.cdiv(P, TP)),
        in_specs=[
            pl.BlockSpec((TN, H), lambda i, p: (i, 0)),
            pl.BlockSpec((TP, H), lambda i, p: (p, 0)),
            pl.BlockSpec((1, TP), lambda i, p: (0, p)),
            pl.BlockSpec((H, TP), lambda i, p: (0, p)),
            pl.BlockSpec((1, H), lambda i, p: (0, 0)),
            pl.BlockSpec((1, H), lambda i, p: (0, 0)),
            pl.BlockSpec((1, H), lambda i, p: (0, 0)),
        ],
        out_specs=pl.BlockSpec((TN, H), lambda i, p: (i, 0)),
        scratch_shapes=[pltpu.VMEM((TN, H), jnp.float32)],
        compiler_params=_cparams(("parallel", "arbitrary")),
    )(x.reshape(N, H), w1, b1, w2, b2, ln_g, ln_b)
    return out.reshape(B, S, H)


def linear_out(x, w, b, matmul_dtype):
    """Final vocab projection x W^T + b; weight streamed on the slow (outer) axis."""
    B, S, H = x.shape
    N = B * S
    V = w.shape[0]
    TN = _row_tile(N)
    TV = _vocab_tile(V)

    kernel = functools.partial(linear_kernel, matmul_dtype=matmul_dtype)
    out = pl.pallas_call(
        kernel,
        out_shape=jax.ShapeDtypeStruct((N, V), jnp.float32),
        grid=(pl.cdiv(V, TV), pl.cdiv(N, TN)),      # vocab outer -> W streamed once
        in_specs=[
            pl.BlockSpec((TN, H), lambda j, i: (i, 0)),
            pl.BlockSpec((TV, H), lambda j, i: (j, 0)),
            pl.BlockSpec((1, TV), lambda j, i: (0, j)),
        ],
        out_specs=pl.BlockSpec((TN, TV), lambda j, i: (i, j)),
        compiler_params=_cparams(("parallel", "parallel")),
    )(x.reshape(N, H), w, b)
    return out.reshape(B, S, V)


# ----------------------------------------------------------------------------
# Parameter prep (one-time weight cast / bias reshape) and forward
# ----------------------------------------------------------------------------
def prepare_params(params, matmul_dtype=jnp.bfloat16):
    md = matmul_dtype
    act = _act_dtype(md)
    H = params["word_emb"].shape[1]
    V = params["out_w"].shape[0]
    f32 = jnp.float32
    prepped = {
        "word_emb": params["word_emb"].astype(act),
        "pos_emb": params["pos_emb"].astype(act),
        "out_w": params["out_w"].astype(md),
        "out_b": params["out_b"].reshape(1, V).astype(f32),
        "layers": [],
    }
    for lp in params["layers"]:
        P = lp["ff_w1"].shape[0]
        prepped["layers"].append({
            "sa_wq": lp["sa_wq"].astype(md), "sa_wk": lp["sa_wk"].astype(md),
            "sa_wv": lp["sa_wv"].astype(md), "sa_wo": lp["sa_wo"].astype(md),
            "sa_bo": lp["sa_bo"].reshape(1, H).astype(f32),
            "ea_wq": lp["ea_wq"].astype(md), "ea_wk": lp["ea_wk"].astype(md),
            "ea_wv": lp["ea_wv"].astype(md), "ea_wo": lp["ea_wo"].astype(md),
            "ea_bo": lp["ea_bo"].reshape(1, H).astype(f32),
            "ff_w1": lp["ff_w1"].astype(md),
            "ff_b1": lp["ff_b1"].reshape(1, P).astype(f32),
            "ff_w2": lp["ff_w2"].astype(md),
            "ff_b2": lp["ff_b2"].reshape(1, H).astype(f32),
            "ln1_g": lp["ln1_g"].reshape(1, H).astype(f32),
            "ln1_b": lp["ln1_b"].reshape(1, H).astype(f32),
            "ln2_g": lp["ln2_g"].reshape(1, H).astype(f32),
            "ln2_b": lp["ln2_b"].reshape(1, H).astype(f32),
            "ln3_g": lp["ln3_g"].reshape(1, H).astype(f32),
            "ln3_b": lp["ln3_b"].reshape(1, H).astype(f32),
        })
    return prepped


def decoder_forward(params, trg_tokens, enc_src, trg_mask, src_mask, heads,
                    matmul_dtype=jnp.bfloat16):
    """params must come from prepare_params(..., matmul_dtype)."""
    md = matmul_dtype
    act = _act_dtype(md)
    B, Sq = trg_tokens.shape

    # word + positional embeddings (gather is host-side glue)
    pos = jnp.arange(Sq)
    x = (params["word_emb"][trg_tokens]
         + params["pos_emb"][pos][None, :, :]).astype(act)
    enc = enc_src.astype(act)
    # TODO(synk): dropout is identity (eval mode / p=0); no RNG path implemented.

    # additive mask biases (0 keep / -1e30 mask), compact dtype, built once
    neg = jnp.float32(-1e30)
    tbias = jnp.where(trg_mask[:, 0] > 0, 0.0, neg).astype(act)     # (B, Sq, Sq)
    sbias = jnp.where(src_mask[:, 0] > 0, 0.0, neg).astype(act)     # (B, 1|Sq, Sk)

    for lp in params["layers"]:
        k, v = kv_project(x, lp["sa_wk"], lp["sa_wv"], md)
        x = mha_add_ln(x, k, v, tbias, lp["sa_wq"], lp["sa_wo"], lp["sa_bo"],
                       lp["ln1_g"], lp["ln1_b"], heads, md, act)
        k, v = kv_project(enc, lp["ea_wk"], lp["ea_wv"], md)
        x = mha_add_ln(x, k, v, sbias, lp["ea_wq"], lp["ea_wo"], lp["ea_bo"],
                       lp["ln2_g"], lp["ln2_b"], heads, md, act)
        x = ffn_add_ln(x, lp["ff_w1"], lp["ff_b1"], lp["ff_w2"], lp["ff_b2"],
                       lp["ln3_g"], lp["ln3_b"], md, act)

    return linear_out(x, params["out_w"], params["out_b"], md)


# ----------------------------------------------------------------------------
# Pure-JAX reference (for correctness check)
# ----------------------------------------------------------------------------
def _mha_ref(q, k, v, mask, wq, wk, wv, wo, bo, heads):
    B, Sq, H = q.shape
    hs = H // heads
    Q = (q @ wq.T).reshape(B, Sq, heads, hs).transpose(0, 2, 1, 3)
    K = (k @ wk.T).reshape(B, -1, heads, hs).transpose(0, 2, 3, 1)
    V = (v @ wv.T).reshape(B, -1, heads, hs).transpose(0, 2, 1, 3)
    s = (Q @ K) / jnp.sqrt(jnp.float32(hs))
    s = jnp.where(mask[:, None] == 0, -jnp.inf, s)
    a = jax.nn.softmax(s, axis=3)
    x = (a @ V).transpose(0, 2, 1, 3).reshape(B, Sq, H)
    return x @ wo.T + bo


def _ln_ref(x, g, b, eps=1e-5):
    m = x.mean(-1, keepdims=True)
    v = ((x - m) ** 2).mean(-1, keepdims=True)
    return (x - m) / jnp.sqrt(v + eps) * g + b


def decoder_ref(params, trg_tokens, enc_src, trg_mask, src_mask, heads):
    B, Sq = trg_tokens.shape
    Sk = enc_src.shape[1]
    x = params["word_emb"][trg_tokens] + params["pos_emb"][jnp.arange(Sq)][None]
    tmask = jnp.broadcast_to(trg_mask[:, 0], (B, Sq, Sq))
    smask = jnp.broadcast_to(src_mask[:, 0], (B, Sq, Sk))
    for lp in params["layers"]:
        sa = _mha_ref(x, x, x, tmask, lp["sa_wq"], lp["sa_wk"], lp["sa_wv"],
                      lp["sa_wo"], lp["sa_bo"], heads)
        x = _ln_ref(x + sa, lp["ln1_g"], lp["ln1_b"])
        ea = _mha_ref(x, enc_src, enc_src, smask, lp["ea_wq"], lp["ea_wk"],
                      lp["ea_wv"], lp["ea_wo"], lp["ea_bo"], heads)
        x = _ln_ref(x + ea, lp["ln2_g"], lp["ln2_b"])
        h = jnp.maximum(x @ lp["ff_w1"].T + lp["ff_b1"], 0.0)
        ff = h @ lp["ff_w2"].T + lp["ff_b2"]
        x = _ln_ref(x + ff, lp["ln3_g"], lp["ln3_b"])
    return x @ params["out_w"].T + params["out_b"]


# ----------------------------------------------------------------------------
# Deterministic parameter init
# ----------------------------------------------------------------------------
def init_params(key, vocab, H, layers, heads, pf, max_len):
    keys = jax.random.split(key, 4 + layers)

    def w(k, shape, scale=0.1):
        return jax.random.normal(k, shape, jnp.float32) * scale

    params = {
        "word_emb": w(keys[0], (vocab, H)),
        "pos_emb": w(keys[1], (max_len, H)),
        "out_w": w(keys[2], (vocab, H)),
        "out_b": w(keys[3], (vocab,), 0.01),
        "layers": [],
    }
    for l in range(layers):
        lk = jax.random.split(keys[4 + l], 14)
        params["layers"].append({
            "sa_wq": w(lk[0], (H, H)), "sa_wk": w(lk[1], (H, H)),
            "sa_wv": w(lk[2], (H, H)), "sa_wo": w(lk[3], (H, H)),
            "sa_bo": w(lk[4], (H,), 0.01),
            "ea_wq": w(lk[5], (H, H)), "ea_wk": w(lk[6], (H, H)),
            "ea_wv": w(lk[7], (H, H)), "ea_wo": w(lk[8], (H, H)),
            "ea_bo": w(lk[9], (H,), 0.01),
            "ff_w1": w(lk[10], (pf, H)), "ff_b1": w(lk[11], (pf,), 0.01),
            "ff_w2": w(lk[12], (H, pf)), "ff_b2": w(lk[13], (H,), 0.01),
            "ln1_g": jnp.ones((H,), jnp.float32), "ln1_b": jnp.zeros((H,), jnp.float32),
            "ln2_g": jnp.ones((H,), jnp.float32), "ln2_b": jnp.zeros((H,), jnp.float32),
            "ln3_g": jnp.ones((H,), jnp.float32), "ln3_b": jnp.zeros((H,), jnp.float32),
        })
    return params


if __name__ == "__main__":
    B, Sq, Sk = 2, 8, 10
    H, heads, pf, n_layers, vocab, max_len = 32, 4, 64, 2, 16, 64

    key = jax.random.PRNGKey(0)
    k_params, k_tok, k_enc = jax.random.split(key, 3)

    params = init_params(k_params, vocab, H, n_layers, heads, pf, max_len)
    trg_tokens = jax.random.randint(k_tok, (B, Sq), 0, vocab, dtype=jnp.int32)
    enc_src = jax.random.normal(k_enc, (B, Sk, H), jnp.float32)

    # trg_mask: causal (B, 1, Sq, Sq); src_mask: all-ones (B, 1, 1, Sk)
    trg_mask = jnp.broadcast_to(jnp.tril(jnp.ones((Sq, Sq), jnp.float32))[None, None],
                                (B, 1, Sq, Sq))
    src_mask = jnp.ones((B, 1, 1, Sk), jnp.float32)

    ref = decoder_ref(params, trg_tokens, enc_src, trg_mask, src_mask, heads)

    # f32 matmul path — tight correctness check.
    pp_f32 = prepare_params(params, jnp.float32)
    out = decoder_forward(pp_f32, trg_tokens, enc_src, trg_mask, src_mask, heads,
                          matmul_dtype=jnp.float32)
    out = jax.block_until_ready(out)
    assert out.shape == (B, Sq, vocab), out.shape
    assert jnp.allclose(out, ref, rtol=1e-2, atol=1e-2), float(jnp.abs(out - ref).max())

    # bf16 default path (bf16 weights + activations, f32 accumulation) — looser check.
    pp_bf16 = prepare_params(params, jnp.bfloat16)
    fwd = jax.jit(lambda p, t, e, tm, sm: decoder_forward(
        p, t, e, tm, sm, heads, matmul_dtype=jnp.bfloat16))
    out_bf16 = fwd(pp_bf16, trg_tokens, enc_src, trg_mask, src_mask)
    out_bf16 = jax.block_until_ready(out_bf16)
    assert out_bf16.shape == (B, Sq, vocab), out_bf16.shape
    assert jnp.allclose(out_bf16, ref, rtol=1e-1, atol=1e-1), \
        float(jnp.abs(out_bf16 - ref).max())

    print("KERNEL_OK")
</pallas_src>

<mosaic_0001>
module attributes {stable_mosaic.version = 11 : i64} {
  func.func @kv_proj_kernel(%arg0: i32, %arg1: memref<16x32xf32, #tpu.memory_space<vmem>>, %arg2: memref<32x32xf32, #tpu.memory_space<vmem>>, %arg3: memref<32x32xf32, #tpu.memory_space<vmem>>, %arg4: memref<16x32xf32, #tpu.memory_space<vmem>>, %arg5: memref<16x32xf32, #tpu.memory_space<vmem>>) attributes {dimension_semantics = [#tpu.dimension_semantics<parallel>], iteration_bounds = array<i64: 1>, scalar_prefetch = 0 : i64, scratch_operands = 0 : i64, tpu.core_type = #tpu.core_type<tc>, window_params = [{transform_indices = @transform_0, window_bounds = array<i64: 16, 32>}, {pipeline_mode = #tpu.pipeline_mode<synchronous>, transform_indices = @transform_1, window_bounds = array<i64: 32, 32>}, {pipeline_mode = #tpu.pipeline_mode<synchronous>, transform_indices = @transform_2, window_bounds = array<i64: 32, 32>}, {transform_indices = @transform_3, window_bounds = array<i64: 16, 32>}, {transform_indices = @transform_4, window_bounds = array<i64: 16, 32>}]} {
    %c0 = arith.constant 0 : index
    %c0_0 = arith.constant 0 : index
    %0 = vector.load %arg1[%c0, %c0_0] : memref<16x32xf32, #tpu.memory_space<vmem>>, vector<16x32xf32>
    %c0_1 = arith.constant 0 : index
    %c0_2 = arith.constant 0 : index
    %1 = vector.load %arg2[%c0_1, %c0_2] : memref<32x32xf32, #tpu.memory_space<vmem>>, vector<32x32xf32>
    %cst = arith.constant dense<0.000000e+00> : vector<16x32xf32>
    %2 = tpu.matmul %0, %1, %cst {dimension_numbers = #tpu.dot_dimension_numbers<[1], [1], [0], [0], [0, 0, 1, 0], [], []>} : vector<16x32xf32>, vector<32x32xf32>, vector<16x32xf32> -> vector<16x32xf32>
    %c0_3 = arith.constant 0 : index
    %c0_4 = arith.constant 0 : index
    %3 = vector.load %arg4[%c0_3, %c0_4] : memref<16x32xf32, #tpu.memory_space<vmem>>, vector<16x32xf32>
    tpu.vector_store %arg4[%c0_3, %c0_4], %2 {strides = array<i32>} : memref<16x32xf32, #tpu.memory_space<vmem>>, vector<16x32xf32>,
    %c0_5 = arith.constant 0 : index
    %c0_6 = arith.constant 0 : index
    %4 = vector.load %arg3[%c0_5, %c0_6] : memref<32x32xf32, #tpu.memory_space<vmem>>, vector<32x32xf32>
    %cst_7 = arith.constant dense<0.000000e+00> : vector<16x32xf32>
    %5 = tpu.matmul %0, %4, %cst_7 {dimension_numbers = #tpu.dot_dimension_numbers<[1], [1], [0], [0], [0, 0, 1, 0], [], []>} : vector<16x32xf32>, vector<32x32xf32>, vector<16x32xf32> -> vector<16x32xf32>
    %c0_8 = arith.constant 0 : index
    %c0_9 = arith.constant 0 : index
    %6 = vector.load %arg5[%c0_8, %c0_9] : memref<16x32xf32, #tpu.memory_space<vmem>>, vector<16x32xf32>
    tpu.vector_store %arg5[%c0_8, %c0_9], %5 {strides = array<i32>} : memref<16x32xf32, #tpu.memory_space<vmem>>, vector<16x32xf32>,
    return
  }
  func.func @transform_0(%arg0: i32) -> (i32, i32) {
    %c0_i32 = arith.constant 0 : i32
    %c0_i32_0 = arith.constant 0 : i32
    return %arg0, %c0_i32 : i32, i32
  }
  func.func @transform_1(%arg0: i32) -> (i32, i32) {
    %c0_i32 = arith.constant 0 : i32
    %c0_i32_0 = arith.constant 0 : i32
    %c0_i32_1 = arith.constant 0 : i32
    return %c0_i32, %c0_i32_0 : i32, i32
  }
  func.func @transform_2(%arg0: i32) -> (i32, i32) {
    %c0_i32 = arith.constant 0 : i32
    %c0_i32_0 = arith.constant 0 : i32
    %c0_i32_1 = arith.constant 0 : i32
    return %c0_i32, %c0_i32_0 : i32, i32
  }
  func.func @transform_3(%arg0: i32) -> (i32, i32) {
    %c0_i32 = arith.constant 0 : i32
    %c0_i32_0 = arith.constant 0 : i32
    return %arg0, %c0_i32 : i32, i32
  }
  func.func @transform_4(%arg0: i32) -> (i32, i32) {
    %c0_i32 = arith.constant 0 : i32
    %c0_i32_0 = arith.constant 0 : i32
    return %arg0, %c0_i32 : i32, i32
  }
}

</mosaic_0001>

<llo_original>
// kernel: tpu_custom_call.1
$region0: #{tpu_custom_call.1}
  #allocation0 [shape = 'u32[]', space=smem, size = 0x4, offset = 0x4, fixed_abs, tag = 'smem constant byte address 0x4 - core index']
  #allocation1 [shape = 'u32[72,128]{1,0:T(1,128)}', space=vmem, size = 0x9000, scoped, tag = 'internal scratch']
  %s0 = inlined_call_operand.hbm [shape: f32[16,32], index: 0, kind: input, shape index: {}]
  %s1 = inlined_call_operand.hbm [shape: f32[32,32], index: 1, kind: input, shape index: {}]
  %s2 = inlined_call_operand.hbm [shape: f32[32,32], index: 2, kind: input, shape index: {}]
  %s3 = inlined_call_operand.hbm [shape: f32[16,32], index: 3, kind: output, shape index: {0}]
  %s4 = inlined_call_operand.hbm [shape: f32[16,32], index: 4, kind: output, shape index: {1}]
  %5 = xla_tuple %s3, %s4
  %s6 = sld [smem:[#allocation0]]
  $region42: #{tpu_custom_call.1} parent=0
    _
  %s8 = ssub.s32 1, %s6
  %s9 = scalar_select 0, %s8, %s6
  $region1: #{tpu_custom_call.1} parent=0
    #allocation2 [shape = 'u8[8192]{0}', space=vmem, size = 0x2000, scoped, tag = 'input window, operand 0, single buffered']
    #allocation3 [shape = 's32[1]{0}', space=sflag, size = 0x4, scoped, tag = 'scoped memory for tpu_custom_call.1']
    #allocation4 [shape = 's32[1]{0}', space=sflag, size = 0x4, scoped, tag = 'scoped memory for tpu_custom_call.1']
    #allocation5 [shape = 'u8[16384]{0}', space=vmem, size = 0x4000, scoped, tag = 'input window, operand 1, single buffered']
    #allocation6 [shape = 's32[1]{0}', space=sflag, size = 0x4, scoped, tag = 'scoped memory for tpu_custom_call.1']
    #allocation7 [shape = 'u8[16384]{0}', space=vmem, size = 0x4000, scoped, tag = 'input window, operand 2, single buffered']
    #allocation8 [shape = 'u8[8192]{0}', space=vmem, size = 0x2000, scoped, tag = 'output window, operand 0, single buffered']
    #allocation9 [shape = 'u8[8192]{0}', space=vmem, size = 0x2000, scoped, tag = 'output window, operand 1, single buffered']
    #allocation10 [shape = 's32[1]{0}', space=sflag, size = 0x4, scoped, tag = 'scoped memory for tpu_custom_call.1']
    %10 = vsyncpa [#allocation3], 0
    %11 = vsyncpa [#allocation6], 0
    %12 = vsyncpa [#allocation4], 0
    %13 = vsyncpa [#allocation10], 0
    // Predicated region
    $region2: #{tpu_custom_call.1} parent=1 // pred_check
      _
    $region3: #{tpu_custom_call.1} parent=1 // pred_check_branch
      %15 = sbr.rel (0) target = $region5
    $region4: #{tpu_custom_call.1} parent=1 // pred_region
      %17 = vsyncadd [#allocation3], 0
      %s18 = sshll.u32 %s0, 4
      %s19 = int_to_ptr.hbm [resolvable:$true] %s18
      %s20 = sshll.u32 [#allocation2], 4
      %s21 = int_to_ptr.vmem [resolvable:$true] %s20
      %26 = dma.hbm_to_vmem [thread:$0]  %s19, 256, %s21, [#allocation3], 128, 128, 8
    $region5: #{tpu_custom_call.1} parent=1 // pred_fallthru
      _
    // Predicated region
    $region6: #{tpu_custom_call.1} parent=1 // pred_check
      _
    $region7: #{tpu_custom_call.1} parent=1 // pred_check_branch
      %28 = sbr.rel (0) target = $region9
    $region8: #{tpu_custom_call.1} parent=1 // pred_region
      %30 = vsyncadd [#allocation6], 0
      %s31 = sshll.u32 %s1, 4
      %s32 = int_to_ptr.hbm [resolvable:$true] %s31
      %s33 = sshll.u32 [#allocation5], 4
      %s34 = int_to_ptr.vmem [resolvable:$true] %s33
      %39 = dma.hbm_to_vmem [thread:$0]  %s32, 512, %s34, [#allocation6], 128, 128, 8
    $region9: #{tpu_custom_call.1} parent=1 // pred_fallthru
      _
    // Predicated region
    $region10: #{tpu_custom_call.1} parent=1 // pred_check
      _
    $region11: #{tpu_custom_call.1} parent=1 // pred_check_branch
      %41 = sbr.rel (0) target = $region13
    $region12: #{tpu_custom_call.1} parent=1 // pred_region
      %43 = vsyncadd [#allocation6], 0
      %s44 = sshll.u32 %s2, 4
      %s45 = int_to_ptr.hbm [resolvable:$true] %s44
      %s46 = sshll.u32 [#allocation7], 4
      %s47 = int_to_ptr.vmem [resolvable:$true] %s46
      %52 = dma.hbm_to_vmem [thread:$0]  %s45, 512, %s47, [#allocation6], 128, 128, 8
    $region13: #{tpu_custom_call.1} parent=1 // pred_fallthru
      _
    // Predicated region
    $region14: #{tpu_custom_call.1} parent=1 // pred_check
      _
    $region15: #{tpu_custom_call.1} parent=1 // pred_check_branch
      %54 = sbr.rel (0) target = $region17
    $region16: #{tpu_custom_call.1} parent=1 // pred_region
      %56 = dma.done [#allocation3], 256
    $region17: #{tpu_custom_call.1} parent=1 // pred_fallthru
      _
    // Predicated region
    $region18: #{tpu_custom_call.1} parent=1 // pred_check
      _
    $region19: #{tpu_custom_call.1} parent=1 // pred_check_branch
      %58 = sbr.rel (0) target = $region21
    $region20: #{tpu_custom_call.1} parent=1 // pred_region
      %60 = dma.done [#allocation6], 512
    $region21: #{tpu_custom_call.1} parent=1 // pred_fallthru
      _
    // Predicated region
    $region22: #{tpu_custom_call.1} parent=1 // pred_check
      _
    $region23: #{tpu_custom_call.1} parent=1 // pred_check_branch
      %62 = sbr.rel (0) target = $region25
    $region24: #{tpu_custom_call.1} parent=1 // pred_region
      %64 = dma.done [#allocation6], 512
    $region25: #{tpu_custom_call.1} parent=1 // pred_fallthru
      _
    %v65 = vld [vmem:[#allocation2] sm:$0xff]
    %v66 = vld [vmem:[#allocation2 + $0x8] sm:$0xff]
    %v67 = vld [vmem:[#allocation5] sm:$0xff]
    %v68 = vld [vmem:[#allocation5 + $0x8] sm:$0xff]
    %v69 = vld [vmem:[#allocation5 + $0x10] sm:$0xff]
    %v70 = vld [vmem:[#allocation5 + $0x18] sm:$0xff]
    %vm71 = vcmask 261120
    %v73 = vsel %vm71, %v65, 0
    %v76 = vsel %vm71, %v66, 0
    %v79 = vsel %vm71, %v67, 0
    %v82 = vsel %vm71, %v68, 0
    %v85 = vsel %vm71, %v69, 0
    %v88 = vsel %vm71, %v70, 0
    %90 = vmatpush.xpose.msra.mxu0 0.0
    %91 = vmatpush.xpose.msra.mxu0 0.0
    %92 = vmatpush.xpose.msra.mxu0 0.0
    %93 = vmatpush.xpose.msra.mxu0 0.0
    %94 = vmatpush.xpose.msra.mxu0 0.0
    %95 = vmatpush.xpose.msra.mxu0 0.0
    %96 = vmatpush.xpose.msra.mxu0 0.0
    %97 = vmatpush.xpose.msra.mxu0 0.0
    %98 = vmatpush.xpose.msra.mxu0 0.0
    %99 = vmatpush.xpose.msra.mxu0 0.0
    %100 = vmatpush.xpose.msra.mxu0 0.0
    %101 = vmatpush.xpose.msra.mxu0 0.0
    %102 = vmatpush.xpose.msra.mxu0 %v88
    %103 = vmatpush.xpose.msra.mxu0 %v85
    %104 = vmatpush.xpose.msra.mxu0 %v82
    %105 = vmatpush.xpose.msra.mxu0 %v79
    %106 = vmatmul.f32.gmra.mxu0 %v73
    %v107 = vpop.f32.mrf.mxu0
    %v108 = vadd.f32 0.0, %v107
    %109 = vmatmul.f32.gmra.mxu0 %v76
    %v110 = vpop.f32.mrf.mxu0
    %v111 = vadd.f32 0.0, %v110
    %112 = vdwg.mxu0
    %113 = vst.msk [vmem:[#allocation8] sm:$0xff] %vm71, %v108
    %114 = vst.msk [vmem:[#allocation8 + $0x8] sm:$0xff] %vm71, %v111
    %v115 = vld [vmem:[#allocation7] sm:$0xff]
    %v116 = vld [vmem:[#allocation7 + $0x8] sm:$0xff]
    %v117 = vld [vmem:[#allocation7 + $0x10] sm:$0xff]
    %v118 = vld [vmem:[#allocation7 + $0x18] sm:$0xff]
    %v120 = vsel %vm71, %v115, 0
    %v123 = vsel %vm71, %v116, 0
    %v126 = vsel %vm71, %v117, 0
    %v129 = vsel %vm71, %v118, 0
    %131 = vmatpush.xpose.msra.mxu0 0.0
    %132 = vmatpush.xpose.msra.mxu0 0.0
    %133 = vmatpush.xpose.msra.mxu0 0.0
    %134 = vmatpush.xpose.msra.mxu0 0.0
    %135 = vmatpush.xpose.msra.mxu0 0.0
    %136 = vmatpush.xpose.msra.mxu0 0.0
    %137 = vmatpush.xpose.msra.mxu0 0.0
    %138 = vmatpush.xpose.msra.mxu0 0.0
    %139 = vmatpush.xpose.msra.mxu0 0.0
    %140 = vmatpush.xpose.msra.mxu0 0.0
    %141 = vmatpush.xpose.msra.mxu0 0.0
    %142 = vmatpush.xpose.msra.mxu0 0.0
    %143 = vmatpush.xpose.msra.mxu0 %v129
    %144 = vmatpush.xpose.msra.mxu0 %v126
    %145 = vmatpush.xpose.msra.mxu0 %v123
    %146 = vmatpush.xpose.msra.mxu0 %v120
    %147 = vmatmul.f32.gmra.mxu0 %v73
    %v148 = vpop.f32.mrf.mxu0
    %v149 = vadd.f32 0.0, %v148
    %150 = vmatmul.f32.gmra.mxu0 %v76
    %v151 = vpop.f32.mrf.mxu0
    %v152 = vadd.f32 0.0, %v151
    %153 = vdwg.mxu0
    %154 = vst.msk [vmem:[#allocation9] sm:$0xff] %vm71, %v149
    %155 = vst.msk [vmem:[#allocation9 + $0x8] sm:$0xff] %vm71, %v152
    // Predicated region
    $region26: #{tpu_custom_call.1} parent=1 // pred_check
      _
    $region27: #{tpu_custom_call.1} parent=1 // pred_check_branch
      %157 = sbr.rel (0) target = $region29
    $region28: #{tpu_custom_call.1} parent=1 // pred_region
      %159 = vsyncadd [#allocation4], 0
      %s160 = sshll.u32 [#allocation8], 4
      %s161 = int_to_ptr.vmem [resolvable:$true] %s160
      %s162 = sshll.u32 %s3, 4
      %s163 = int_to_ptr.hbm [resolvable:$true] %s162
      %168 = dma.vmem_to_hbm [thread:$0]  %s161, 256, %s163, [#allocation4], 128, 128, 8
    $region29: #{tpu_custom_call.1} parent=1 // pred_fallthru
      _
    // Predicated region
    $region30: #{tpu_custom_call.1} parent=1 // pred_check
      _
    $region31: #{tpu_custom_call.1} parent=1 // pred_check_branch
      %170 = sbr.rel (0) target = $region33
    $region32: #{tpu_custom_call.1} parent=1 // pred_region
      %172 = vsyncadd [#allocation10], 0
      %s173 = sshll.u32 [#allocation9], 4
      %s174 = int_to_ptr.vmem [resolvable:$true] %s173
      %s175 = sshll.u32 %s4, 4
      %s176 = int_to_ptr.hbm [resolvable:$true] %s175
      %181 = dma.vmem_to_hbm [thread:$0]  %s174, 256, %s176, [#allocation10], 128, 128, 8
    $region33: #{tpu_custom_call.1} parent=1 // pred_fallthru
      _
    // Predicated region
    $region34: #{tpu_custom_call.1} parent=1 // pred_check
      _
    $region35: #{tpu_custom_call.1} parent=1 // pred_check_branch
      %183 = sbr.rel (0) target = $region37
    $region36: #{tpu_custom_call.1} parent=1 // pred_region
      %185 = dma.done [#allocation4], 256
    $region37: #{tpu_custom_call.1} parent=1 // pred_fallthru
      _
    // Predicated region
    $region38: #{tpu_custom_call.1} parent=1 // pred_check
      _
    $region39: #{tpu_custom_call.1} parent=1 // pred_check_branch
      %187 = sbr.rel (0) target = $region41
    $region40: #{tpu_custom_call.1} parent=1 // pred_region
      %189 = dma.done [#allocation10], 256
    $region41: #{tpu_custom_call.1} parent=1 // pred_fallthru
      _
    %190 = vsyncpa [#allocation3], 1
    %191 = vsyncpa [#allocation6], 1
    %192 = vsyncpa [#allocation4], 1
    %193 = vsyncpa [#allocation10], 1

</llo_original>
